<compile_context>
chip_gen: v6e
topology: v6e:2x2x1
jax: 0.10.0
libtpu: 0.0.40
codegen_flags: <defaults>
</compile_context>

<pallas_src>
import functools

import jax
import jax.numpy as jnp
from jax import lax
from jax.experimental import pallas as pl
from jax.experimental.pallas import tpu as pltpu

EPS = 1e-5
NEG_SLOPE = 0.01
LANE = 128


def _leaky_relu(h):
    # mul + max: 2 VPU ops (vs cmp/mul/select = 3)
    return jnp.maximum(h, NEG_SLOPE * h)


def _fold_bn2(w2, g2, be2, rowsum, gram, cpad, pad_lanes, inv_n):
    """Fold training-mode BN2 into per-feature (scale, shift).

    rowsum : (64,1)  sum over batch lanes of h1_act  (padded lanes included)
    gram   : (64,64) h1_act @ h1_act^T               (padded lanes included)
    cpad   : (64,1)  value of h1_act on a zero-padded lane ( = lrelu(c) )

    The padded-lane pollution is removed analytically:
      rowsum_true = rowsum - pad*cpad
      diag(W2 gram_true W2^T) = diag(W2 gram W2^T) - pad*(W2 cpad)^2
    """
    rs = rowsum - pad_lanes * cpad                                        # (64,1)
    w2c = jnp.dot(w2, cpad, preferred_element_type=jnp.float32)           # (32,1)
    mu2 = jnp.dot(w2, rs, preferred_element_type=jnp.float32) * inv_n     # (32,1)
    m = jnp.dot(w2, gram, preferred_element_type=jnp.float32)             # (32,64) MXU
    e2 = (jnp.sum(m * w2, axis=1, keepdims=True) - pad_lanes * (w2c * w2c)) * inv_n
    var2 = jnp.maximum(e2 - mu2 * mu2, 0.0)                               # clamp >= 0
    scale2 = g2 * lax.rsqrt(var2 + EPS)                                   # rsqrt -> EUP
    shift2 = be2 - mu2 * scale2
    return scale2, shift2


# ---------------------------------------------------------------------------
# Path 1: fully fused single-pass kernel (whole padded batch resident in VMEM).
# ---------------------------------------------------------------------------
def hqcnn_fused_kernel(x_ref, w1_ref, g1_ref, be1_ref, w2_ref, g2_ref, be2_ref,
                       w3_ref, b3_ref, o_ref, *, n_real):
    n_pad = x_ref.shape[1]
    inv_n = jnp.float32(1.0 / n_real)
    pad_lanes = jnp.float32(n_pad - n_real)

    x = x_ref[...]                                   # (2, Npad), lane-dense
    x0 = x[0:1, :]
    x1 = x[1:2, :]
    w1 = w1_ref[...]                                 # (64, 2)
    w10 = w1[:, 0:1]
    w11 = w1[:, 1:2]                                 # (64, 1)

    # ---- x batch moments (padded lanes are zero; divide by the real batch size).
    mx0 = jnp.sum(x0, axis=1, keepdims=True) * inv_n                     # (1,1)
    mx1 = jnp.sum(x1, axis=1, keepdims=True) * inv_n
    vx0 = jnp.sum(x0 * x0, axis=1, keepdims=True) * inv_n - mx0 * mx0
    vx1 = jnp.sum(x1 * x1, axis=1, keepdims=True) * inv_n - mx1 * mx1
    cxy = jnp.sum(x0 * x1, axis=1, keepdims=True) * inv_n - mx0 * mx1

    # ---- BN1 folded into layer 1: lrelu(a*x0 + b*x1 + c).  (b1 cancels under BN.)
    mu1 = w10 * mx0 + w11 * mx1                                          # (64,1)
    var1 = jnp.maximum(
        w10 * w10 * vx0 + 2.0 * (w10 * w11) * cxy + w11 * w11 * vx1, 0.0)
    scale1 = g1_ref[...] * lax.rsqrt(var1 + EPS)
    a = w10 * scale1
    b = w11 * scale1
    c = be1_ref[...] - mu1 * scale1

    h1 = _leaky_relu(a * x0 + b * x1 + c)                                # (64, Npad)

    # ---- Layer-2 batch statistics on the XLU (rowsum) and MXU (Gram matrix);
    #      no h2*h2 VALU pass, no per-element pad mask.
    rowsum = jnp.sum(h1, axis=1, keepdims=True)                          # (64,1)
    gram = lax.dot_general(h1, h1, (((1,), (1,)), ((), ())),
                           preferred_element_type=jnp.float32)           # (64,64)
    w2 = w2_ref[...]
    scale2, shift2 = _fold_bn2(w2, g2_ref[...], be2_ref[...], rowsum, gram,
                               _leaky_relu(c), pad_lanes, inv_n)

    # ---- Layer 2 (one MXU push; b2 cancels) + fused BN2 + LeakyReLU.
    h2 = jnp.dot(w2, h1, preferred_element_type=jnp.float32)             # (32, Npad)
    h2 = _leaky_relu(scale2 * h2 + shift2)

    # ---- Layer 3: out width 1 is MXU-degenerate -> VPU mul + sublane reduce.
    out = jnp.sum(h2 * w3_ref[...], axis=0, keepdims=True) + b3_ref[...]  # (1, Npad)
    o_ref[...] = out.astype(o_ref.dtype)


# ---------------------------------------------------------------------------
# Path 2: two-sweep N-tiled kernel for large batches (VMEM bounded by the tile).
# ---------------------------------------------------------------------------
def hqcnn_tiled_kernel(x_ref, a_ref, b_ref, c_ref, w2_ref, g2_ref, be2_ref,
                       w3_ref, b3_ref, o_ref,
                       rowsum_ref, gram_ref, scale2_ref, shift2_ref,
                       *, n_real, n_pad):
    """grid = (2, n_tiles), both axes 'arbitrary' (strictly sequential).

    sweep 0 (p==0): recompute h1_act per lane tile, accumulate the layer-2
                    rowsum + Gram statistics into persistent VMEM scratch.
    sweep 1 (p==1): finalize BN2 scale/shift once (tile 0), then recompute
                    h1_act/h2 per tile, apply BN2 + LeakyReLU + layer 3, and
                    store lane-dense output tiles.
    BN1 is already folded into (a, b, c) — computed from the x moments in the
    wrapper (O(N*2) work) — so each sweep is a single pass over each lane tile.
    Output tiles are revisited across sweeps; sweep 0 writes zeros so the
    write-back is deterministic (sweep 1 overwrites them).
    """
    p = pl.program_id(0)                     # sweep index: 0 = stats, 1 = apply
    t = pl.program_id(1)                     # lane-tile index
    inv_n = jnp.float32(1.0 / n_real)
    pad_lanes = jnp.float32(n_pad - n_real)

    x = x_ref[...]                           # (2, TILE)
    h1 = _leaky_relu(a_ref[...] * x[0:1, :] + b_ref[...] * x[1:2, :] + c_ref[...])

    @pl.when((p == 0) & (t == 0))
    def _init():
        rowsum_ref[...] = jnp.zeros_like(rowsum_ref)
        gram_ref[...] = jnp.zeros_like(gram_ref)

    @pl.when(p == 0)
    def _accumulate():
        rowsum_ref[...] += jnp.sum(h1, axis=1, keepdims=True)
        gram_ref[...] += lax.dot_general(h1, h1, (((1,), (1,)), ((), ())),
                                         preferred_element_type=jnp.float32)
        o_ref[...] = jnp.zeros_like(o_ref)   # placeholder; overwritten in sweep 1

    @pl.when((p == 1) & (t == 0))
    def _finalize():
        scale2, shift2 = _fold_bn2(w2_ref[...], g2_ref[...], be2_ref[...],
                                   rowsum_ref[...], gram_ref[...],
                                   _leaky_relu(c_ref[...]), pad_lanes, inv_n)
        scale2_ref[...] = scale2
        shift2_ref[...] = shift2

    @pl.when(p == 1)
    def _apply():
        h2 = jnp.dot(w2_ref[...], h1, preferred_element_type=jnp.float32)  # (32, TILE)
        h2 = _leaky_relu(scale2_ref[...] * h2 + shift2_ref[...])
        out = jnp.sum(h2 * w3_ref[...], axis=0, keepdims=True) + b3_ref[...]
        o_ref[...] = out.astype(o_ref.dtype)


# ---------------------------------------------------------------------------
# Wrapper
# ---------------------------------------------------------------------------
def _round_up(n, m):
    return ((n + m - 1) // m) * m


def _cost_estimate(n, x_passes):
    macs = n * (2 * 64 + 64 * 32 + 32)
    flops = 2 * macs + n * (6 * 64 + 6 * 32)          # + BN/lrelu elementwise
    param_bytes = 4 * (64 * 2 + 2 * 64 + 32 * 64 + 2 * 32 + 32 + 1)
    return pl.CostEstimate(flops=int(flops), transcendentals=96,
                           bytes_accessed=int(x_passes * 8 * n + 4 * n + param_bytes))


def _bn1_fold_coeffs(x, w1, g1, be1):
    """Closed-form training-mode BN1 fold: BN1(Linear1(x)) == a*x0 + b*x1 + c.

    Tiny (O(N*2) + O(64)) plain-JAX computation used by the tiled path so the
    kernel stays a true two-sweep pipeline.  Uses the centered covariance of x
    (no E[x^2]-mean^2 cancellation) and clamps var >= 0.
    """
    n = x.shape[0]
    mx = jnp.mean(x, axis=0)                          # (2,)
    xc = x - mx
    cov = (xc.T @ xc) / n                             # (2,2)
    w10 = w1[:, 0]
    w11 = w1[:, 1]
    mu1 = w10 * mx[0] + w11 * mx[1]
    var1 = jnp.maximum(w10 * w10 * cov[0, 0] + 2.0 * w10 * w11 * cov[0, 1]
                       + w11 * w11 * cov[1, 1], 0.0)
    scale1 = g1 * lax.rsqrt(var1 + EPS)
    a = w10 * scale1
    b = w11 * scale1
    c = be1 - mu1 * scale1
    return a.reshape(-1, 1), b.reshape(-1, 1), c.reshape(-1, 1)


def hqcnn_forward(x, params, *, fused_max_lanes=8192, tile=1024):
    """x: (N, 2) float32; params in PyTorch layout (Linear weights are (out, in)).

    Small/medium batches use the fully fused single-pass kernel; larger batches
    auto-switch to the two-sweep N-tiled kernel whose VMEM use is bounded by the
    lane tile (independent of N).  NOTE: the batch size must be a static Python
    int (it parameterizes the kernel and the padding analytics).
    """
    n = int(x.shape[0])
    xt_full = x.astype(jnp.float32).T                 # (2, N) — batch on the lane axis

    w1 = params["w1"].astype(jnp.float32)             # (64, 2)
    g1 = params["g1"].reshape(-1, 1).astype(jnp.float32)
    be1 = params["be1"].reshape(-1, 1).astype(jnp.float32)
    w2 = params["w2"].astype(jnp.float32)             # (32, 64)
    g2 = params["g2"].reshape(-1, 1).astype(jnp.float32)
    be2 = params["be2"].reshape(-1, 1).astype(jnp.float32)
    w3 = params["w3"].T.astype(jnp.float32)            # (32, 1)
    b3 = params["b3"].reshape(1, 1).astype(jnp.float32)

    def _full_spec(a):          # grid=(): index_map takes no grid args
        return pl.BlockSpec(a.shape, lambda: (0,) * a.ndim)

    def _const_spec(a):         # grid=(2, n_tiles): whole array, constant block
        return pl.BlockSpec(a.shape, lambda p, t: (0,) * a.ndim)

    n_pad_fused = _round_up(max(n, 1), LANE)
    if n_pad_fused <= fused_max_lanes:
        # -------- fully fused single-pass kernel --------
        n_pad = n_pad_fused
        xt = jnp.pad(xt_full, ((0, 0), (0, n_pad - n)))
        args = (xt, w1, g1, be1, w2, g2, be2, w3, b3)
        out_t = pl.pallas_call(
            functools.partial(hqcnn_fused_kernel, n_real=n),
            grid=(),
            in_specs=[_full_spec(a) for a in args],
            out_specs=pl.BlockSpec((1, n_pad), lambda: (0, 0)),
            out_shape=jax.ShapeDtypeStruct((1, n_pad), jnp.float32),
            compiler_params=pltpu.CompilerParams(
                vmem_limit_bytes=int(min(64 << 20,
                                         max(24 << 20, (8 << 20) + 1600 * n_pad)))),
            cost_estimate=_cost_estimate(n, x_passes=1),
        )(*args)
    else:
        # -------- two-sweep N-tiled kernel --------
        tile = _round_up(max(int(tile), LANE), LANE)
        n_pad = _round_up(n, tile)
        n_tiles = n_pad // tile
        xt = jnp.pad(xt_full, ((0, 0), (0, n_pad - n)))
        a, b, c = _bn1_fold_coeffs(x.astype(jnp.float32), w1,
                                   params["g1"].astype(jnp.float32),
                                   params["be1"].astype(jnp.float32))
        const_args = (a, b, c, w2, g2, be2, w3, b3)
        out_t = pl.pallas_call(
            functools.partial(hqcnn_tiled_kernel, n_real=n, n_pad=n_pad),
            grid=(2, n_tiles),
            in_specs=([pl.BlockSpec((2, tile), lambda p, t: (0, t))]
                      + [_const_spec(arg) for arg in const_args]),
            out_specs=pl.BlockSpec((1, tile), lambda p, t: (0, t)),
            out_shape=jax.ShapeDtypeStruct((1, n_pad), jnp.float32),
            scratch_shapes=[
                pltpu.VMEM((64, 1), jnp.float32),     # rowsum(h1_act)
                pltpu.VMEM((64, 64), jnp.float32),    # h1_act @ h1_act^T (Gram)
                pltpu.VMEM((32, 1), jnp.float32),     # BN2 scale
                pltpu.VMEM((32, 1), jnp.float32),     # BN2 shift
            ],
            compiler_params=pltpu.CompilerParams(
                dimension_semantics=("arbitrary", "arbitrary"),
                vmem_limit_bytes=int(min(64 << 20,
                                         max(16 << 20, (2 << 20) + 2048 * tile)))),
            cost_estimate=_cost_estimate(n, x_passes=2),
        )(xt, *const_args)

    return out_t[:, :n].T                             # (N, 1)


# ---------------------------------------------------------------------------
# Parameter init (PyTorch nn.Linear / nn.BatchNorm1d defaults) + pure-JAX reference
# ---------------------------------------------------------------------------
def init_params(key):
    ks = jax.random.split(key, 6)

    def lin(kw, kb, fan_in, fan_out):
        bound = 1.0 / float(fan_in) ** 0.5
        w = jax.random.uniform(kw, (fan_out, fan_in), jnp.float32, -bound, bound)
        b = jax.random.uniform(kb, (fan_out,), jnp.float32, -bound, bound)
        return w, b

    w1, b1 = lin(ks[0], ks[1], 2, 64)
    w2, b2 = lin(ks[2], ks[3], 64, 32)
    w3, b3 = lin(ks[4], ks[5], 32, 1)
    return {
        "w1": w1, "b1": b1,
        "g1": jnp.ones((64,), jnp.float32), "be1": jnp.zeros((64,), jnp.float32),
        "w2": w2, "b2": b2,
        "g2": jnp.ones((32,), jnp.float32), "be2": jnp.zeros((32,), jnp.float32),
        "w3": w3, "b3": b3,
    }


def hqcnn_ref(x, p):
    """Pure-JAX reference with faithful PyTorch (training-mode) semantics."""
    def bn(h, g, be):
        mean = jnp.mean(h, axis=0, keepdims=True)
        var = jnp.mean((h - mean) ** 2, axis=0, keepdims=True)
        return (h - mean) * lax.rsqrt(var + EPS) * g + be

    h = x @ p["w1"].T + p["b1"]
    h = bn(h, p["g1"], p["be1"])
    h = jnp.where(h > 0, h, NEG_SLOPE * h)
    h = h @ p["w2"].T + p["b2"]
    h = bn(h, p["g2"], p["be2"])
    h = jnp.where(h > 0, h, NEG_SLOPE * h)
    return h @ p["w3"].T + p["b3"]


if __name__ == "__main__":
    key = jax.random.PRNGKey(0)
    kx, kp, kx2 = jax.random.split(key, 3)
    params = init_params(kp)

    # Small batch -> fully fused single-pass kernel.
    n_small = 8
    x_small = jax.random.normal(kx, (n_small, 2), dtype=jnp.float32)
    out_small = jax.block_until_ready(hqcnn_forward(x_small, params))
    ref_small = hqcnn_ref(x_small, params)
    assert out_small.shape == (n_small, 1), out_small.shape
    assert jnp.allclose(out_small, ref_small, atol=1e-4, rtol=1e-4), (
        float(jnp.max(jnp.abs(out_small - ref_small))))

    # Larger batch forced through the two-sweep N-tiled kernel (small tiles for test).
    n_big = 600
    x_big = jax.random.normal(kx2, (n_big, 2), dtype=jnp.float32)
    out_big = jax.block_until_ready(
        hqcnn_forward(x_big, params, fused_max_lanes=0, tile=256))
    ref_big = hqcnn_ref(x_big, params)
    assert out_big.shape == (n_big, 1), out_big.shape
    assert jnp.allclose(out_big, ref_big, atol=1e-3, rtol=1e-3), (
        float(jnp.max(jnp.abs(out_big - ref_big))))

    print("KERNEL_OK")
</pallas_src>

<mosaic_0001>
module attributes {stable_mosaic.version = 11 : i64} {
  func.func @hqcnn_fused_kernel(%arg0: memref<2x128xf32, #tpu.memory_space<vmem>>, %arg1: memref<64x2xf32, #tpu.memory_space<vmem>>, %arg2: memref<64x1xf32, #tpu.memory_space<vmem>>, %arg3: memref<64x1xf32, #tpu.memory_space<vmem>>, %arg4: memref<32x64xf32, #tpu.memory_space<vmem>>, %arg5: memref<32x1xf32, #tpu.memory_space<vmem>>, %arg6: memref<32x1xf32, #tpu.memory_space<vmem>>, %arg7: memref<32x1xf32, #tpu.memory_space<vmem>>, %arg8: memref<1x1xf32, #tpu.memory_space<vmem>>, %arg9: memref<1x128xf32, #tpu.memory_space<vmem>>) attributes {dimension_semantics = [], scalar_prefetch = 0 : i64, scratch_operands = 0 : i64, tpu.core_type = #tpu.core_type<tc>} {
    %c0 = arith.constant 0 : index
    %c0_0 = arith.constant 0 : index
    %0 = vector.load %arg0[%c0, %c0_0] : memref<2x128xf32, #tpu.memory_space<vmem>>, vector<2x128xf32>
    %1 = vector.extract_strided_slice %0 {offsets = [0, 0], sizes = [1, 128], strides = [1, 1]} : vector<2x128xf32> to vector<1x128xf32>
    %2 = vector.extract_strided_slice %0 {offsets = [1, 0], sizes = [1, 128], strides = [1, 1]} : vector<2x128xf32> to vector<1x128xf32>
    %c0_1 = arith.constant 0 : index
    %c0_2 = arith.constant 0 : index
    %3 = vector.load %arg1[%c0_1, %c0_2] : memref<64x2xf32, #tpu.memory_space<vmem>>, vector<64x2xf32>
    %4 = vector.extract_strided_slice %3 {offsets = [0, 0], sizes = [64, 1], strides = [1, 1]} : vector<64x2xf32> to vector<64x1xf32>
    %5 = vector.extract_strided_slice %3 {offsets = [0, 1], sizes = [64, 1], strides = [1, 1]} : vector<64x2xf32> to vector<64x1xf32>
    %cst = arith.constant dense<0.000000e+00> : vector<1xf32>
    %6 = vector.multi_reduction <add>, %1, %cst [1] : vector<1x128xf32> to vector<1xf32>
    %7 = vector.shape_cast %6 : vector<1xf32> to vector<1x1xf32>
    %cst_3 = arith.constant 1.250000e-01 : f32
    %8 = vector.broadcast %cst_3 : f32 to vector<1x1xf32>
    %9 = arith.mulf %7, %8 : vector<1x1xf32>
    %cst_4 = arith.constant dense<0.000000e+00> : vector<1xf32>
    %10 = vector.multi_reduction <add>, %2, %cst_4 [1] : vector<1x128xf32> to vector<1xf32>
    %11 = vector.shape_cast %10 : vector<1xf32> to vector<1x1xf32>
    %cst_5 = arith.constant 1.250000e-01 : f32
    %12 = vector.broadcast %cst_5 : f32 to vector<1x1xf32>
    %13 = arith.mulf %11, %12 : vector<1x1xf32>
    %14 = arith.mulf %1, %1 : vector<1x128xf32>
    %cst_6 = arith.constant dense<0.000000e+00> : vector<1xf32>
    %15 = vector.multi_reduction <add>, %14, %cst_6 [1] : vector<1x128xf32> to vector<1xf32>
    %16 = vector.shape_cast %15 : vector<1xf32> to vector<1x1xf32>
    %cst_7 = arith.constant 1.250000e-01 : f32
    %17 = vector.broadcast %cst_7 : f32 to vector<1x1xf32>
    %18 = arith.mulf %16, %17 : vector<1x1xf32>
    %19 = arith.mulf %9, %9 : vector<1x1xf32>
    %20 = arith.subf %18, %19 : vector<1x1xf32>
    %21 = arith.mulf %2, %2 : vector<1x128xf32>
    %cst_8 = arith.constant dense<0.000000e+00> : vector<1xf32>
    %22 = vector.multi_reduction <add>, %21, %cst_8 [1] : vector<1x128xf32> to vector<1xf32>
    %23 = vector.shape_cast %22 : vector<1xf32> to vector<1x1xf32>
    %cst_9 = arith.constant 1.250000e-01 : f32
    %24 = vector.broadcast %cst_9 : f32 to vector<1x1xf32>
    %25 = arith.mulf %23, %24 : vector<1x1xf32>
    %26 = arith.mulf %13, %13 : vector<1x1xf32>
    %27 = arith.subf %25, %26 : vector<1x1xf32>
    %28 = arith.mulf %1, %2 : vector<1x128xf32>
    %cst_10 = arith.constant dense<0.000000e+00> : vector<1xf32>
    %29 = vector.multi_reduction <add>, %28, %cst_10 [1] : vector<1x128xf32> to vector<1xf32>
    %30 = vector.shape_cast %29 : vector<1xf32> to vector<1x1xf32>
    %cst_11 = arith.constant 1.250000e-01 : f32
    %31 = vector.broadcast %cst_11 : f32 to vector<1x1xf32>
    %32 = arith.mulf %30, %31 : vector<1x1xf32>
    %33 = arith.mulf %9, %13 : vector<1x1xf32>
    %34 = arith.subf %32, %33 : vector<1x1xf32>
    %35 = vector.broadcast %9 : vector<1x1xf32> to vector<64x1xf32>
    %36 = arith.mulf %4, %35 : vector<64x1xf32>
    %37 = vector.broadcast %13 : vector<1x1xf32> to vector<64x1xf32>
    %38 = arith.mulf %5, %37 : vector<64x1xf32>
    %39 = arith.addf %36, %38 : vector<64x1xf32>
    %40 = arith.mulf %4, %4 : vector<64x1xf32>
    %41 = vector.broadcast %20 : vector<1x1xf32> to vector<64x1xf32>
    %42 = arith.mulf %40, %41 : vector<64x1xf32>
    %43 = arith.mulf %4, %5 : vector<64x1xf32>
    %cst_12 = arith.constant 2.000000e+00 : f32
    %44 = vector.broadcast %cst_12 : f32 to vector<64x1xf32>
    %45 = arith.mulf %44, %43 : vector<64x1xf32>
    %46 = vector.broadcast %34 : vector<1x1xf32> to vector<64x1xf32>
    %47 = arith.mulf %45, %46 : vector<64x1xf32>
    %48 = arith.addf %42, %47 : vector<64x1xf32>
    %49 = arith.mulf %5, %5 : vector<64x1xf32>
    %50 = vector.broadcast %27 : vector<1x1xf32> to vector<64x1xf32>
    %51 = arith.mulf %49, %50 : vector<64x1xf32>
    %52 = arith.addf %48, %51 : vector<64x1xf32>
    %cst_13 = arith.constant 0.000000e+00 : f32
    %53 = vector.broadcast %cst_13 : f32 to vector<64x1xf32>
    %54 = arith.maximumf %52, %53 : vector<64x1xf32>
    %c0_14 = arith.constant 0 : index
    %c0_15 = arith.constant 0 : index
    %55 = vector.load %arg2[%c0_14, %c0_15] : memref<64x1xf32, #tpu.memory_space<vmem>>, vector<64x1xf32>
    %cst_16 = arith.constant 9.99999974E-6 : f32
    %56 = vector.broadcast %cst_16 : f32 to vector<64x1xf32>
    %57 = arith.addf %54, %56 : vector<64x1xf32>
    %58 = math.rsqrt %57 : vector<64x1xf32>
    %59 = arith.mulf %55, %58 : vector<64x1xf32>
    %60 = arith.mulf %4, %59 : vector<64x1xf32>
    %61 = arith.mulf %5, %59 : vector<64x1xf32>
    %c0_17 = arith.constant 0 : index
    %c0_18 = arith.constant 0 : index
    %62 = vector.load %arg3[%c0_17, %c0_18] : memref<64x1xf32, #tpu.memory_space<vmem>>, vector<64x1xf32>
    %63 = arith.mulf %39, %59 : vector<64x1xf32>
    %64 = arith.subf %62, %63 : vector<64x1xf32>
    %65 = vector.broadcast %60 : vector<64x1xf32> to vector<64x128xf32>
    %66 = vector.broadcast %1 : vector<1x128xf32> to vector<64x128xf32>
    %67 = arith.mulf %65, %66 : vector<64x128xf32>
    %68 = vector.broadcast %61 : vector<64x1xf32> to vector<64x128xf32>
    %69 = vector.broadcast %2 : vector<1x128xf32> to vector<64x128xf32>
    %70 = arith.mulf %68, %69 : vector<64x128xf32>
    %71 = arith.addf %67, %70 : vector<64x128xf32>
    %72 = vector.broadcast %64 : vector<64x1xf32> to vector<64x128xf32>
    %73 = arith.addf %71, %72 : vector<64x128xf32>
    %cst_19 = arith.constant 0.00999999977 : f32
    %74 = vector.broadcast %cst_19 : f32 to vector<64x128xf32>
    %75 = arith.mulf %74, %73 : vector<64x128xf32>
    %76 = arith.maximumf %73, %75 : vector<64x128xf32>
    %cst_20 = arith.constant dense<0.000000e+00> : vector<64xf32>
    %77 = vector.multi_reduction <add>, %76, %cst_20 [1] : vector<64x128xf32> to vector<64xf32>
    %78 = vector.shape_cast %77 : vector<64xf32> to vector<64x1xf32>
    %cst_21 = arith.constant dense<0.000000e+00> : vector<64x64xf32>
    %79 = tpu.matmul %76, %76, %cst_21 {dimension_numbers = #tpu.dot_dimension_numbers<[1], [1], [0], [0], [0, 0, 1, 0], [], []>} : vector<64x128xf32>, vector<64x128xf32>, vector<64x64xf32> -> vector<64x64xf32>
    %c0_22 = arith.constant 0 : index
    %c0_23 = arith.constant 0 : index
    %80 = vector.load %arg4[%c0_22, %c0_23] : memref<32x64xf32, #tpu.memory_space<vmem>>, vector<32x64xf32>
    %c0_24 = arith.constant 0 : index
    %c0_25 = arith.constant 0 : index
    %81 = vector.load %arg5[%c0_24, %c0_25] : memref<32x1xf32, #tpu.memory_space<vmem>>, vector<32x1xf32>
    %c0_26 = arith.constant 0 : index
    %c0_27 = arith.constant 0 : index
    %82 = vector.load %arg6[%c0_26, %c0_27] : memref<32x1xf32, #tpu.memory_space<vmem>>, vector<32x1xf32>
    %cst_28 = arith.constant 0.00999999977 : f32
    %83 = vector.broadcast %cst_28 : f32 to vector<64x1xf32>
    %84 = arith.mulf %83, %64 : vector<64x1xf32>
    %85 = arith.maximumf %64, %84 : vector<64x1xf32>
    %cst_29 = arith.constant 1.200000e+02 : f32
    %86 = vector.broadcast %cst_29 : f32 to vector<64x1xf32>
    %87 = arith.mulf %86, %85 : vector<64x1xf32>
    %88 = arith.subf %78, %87 : vector<64x1xf32>
    %cst_30 = arith.constant dense<0.000000e+00> : vector<32x1xf32>
    %89 = tpu.matmul %80, %85, %cst_30 {dimension_numbers = #tpu.dot_dimension_numbers<[1], [0], [0], [1], [0, 0, 1, 1], [], []>} : vector<32x64xf32>, vector<64x1xf32>, vector<32x1xf32> -> vector<32x1xf32>
    %cst_31 = arith.constant dense<0.000000e+00> : vector<32x1xf32>
    %90 = tpu.matmul %80, %88, %cst_31 {dimension_numbers = #tpu.dot_dimension_numbers<[1], [0], [0], [1], [0, 0, 1, 1], [], []>} : vector<32x64xf32>, vector<64x1xf32>, vector<32x1xf32> -> vector<32x1xf32>
    %cst_32 = arith.constant 1.250000e-01 : f32
    %91 = vector.broadcast %cst_32 : f32 to vector<32x1xf32>
    %92 = arith.mulf %90, %91 : vector<32x1xf32>
    %cst_33 = arith.constant dense<0.000000e+00> : vector<32x64xf32>
    %93 = tpu.matmul %80, %79, %cst_33 {dimension_numbers = #tpu.dot_dimension_numbers<[1], [0], [0], [1], [0, 0, 1, 1], [], []>} : vector<32x64xf32>, vector<64x64xf32>, vector<32x64xf32> -> vector<32x64xf32>
    %94 = arith.mulf %93, %80 : vector<32x64xf32>
    %cst_34 = arith.constant dense<0.000000e+00> : vector<32xf32>
    %95 = vector.multi_reduction <add>, %94, %cst_34 [1] : vector<32x64xf32> to vector<32xf32>
    %96 = vector.shape_cast %95 : vector<32xf32> to vector<32x1xf32>
    %97 = arith.mulf %89, %89 : vector<32x1xf32>
    %cst_35 = arith.constant 1.200000e+02 : f32
    %98 = vector.broadcast %cst_35 : f32 to vector<32x1xf32>
    %99 = arith.mulf %98, %97 : vector<32x1xf32>
    %100 = arith.subf %96, %99 : vector<32x1xf32>
    %cst_36 = arith.constant 1.250000e-01 : f32
    %101 = vector.broadcast %cst_36 : f32 to vector<32x1xf32>
    %102 = arith.mulf %100, %101 : vector<32x1xf32>
    %103 = arith.mulf %92, %92 : vector<32x1xf32>
    %104 = arith.subf %102, %103 : vector<32x1xf32>
    %cst_37 = arith.constant 0.000000e+00 : f32
    %105 = vector.broadcast %cst_37 : f32 to vector<32x1xf32>
    %106 = arith.maximumf %104, %105 : vector<32x1xf32>
    %cst_38 = arith.constant 9.99999974E-6 : f32
    %107 = vector.broadcast %cst_38 : f32 to vector<32x1xf32>
    %108 = arith.addf %106, %107 : vector<32x1xf32>
    %109 = math.rsqrt %108 : vector<32x1xf32>
    %110 = arith.mulf %81, %109 : vector<32x1xf32>
    %111 = arith.mulf %92, %110 : vector<32x1xf32>
    %112 = arith.subf %82, %111 : vector<32x1xf32>
    %cst_39 = arith.constant dense<0.000000e+00> : vector<32x128xf32>
    %113 = tpu.matmul %80, %76, %cst_39 {dimension_numbers = #tpu.dot_dimension_numbers<[1], [0], [0], [1], [0, 0, 1, 1], [], []>} : vector<32x64xf32>, vector<64x128xf32>, vector<32x128xf32> -> vector<32x128xf32>
    %114 = vector.broadcast %110 : vector<32x1xf32> to vector<32x128xf32>
    %115 = arith.mulf %114, %113 : vector<32x128xf32>
    %116 = vector.broadcast %112 : vector<32x1xf32> to vector<32x128xf32>
    %117 = arith.addf %115, %116 : vector<32x128xf32>
    %cst_40 = arith.constant 0.00999999977 : f32
    %118 = vector.broadcast %cst_40 : f32 to vector<32x128xf32>
    %119 = arith.mulf %118, %117 : vector<32x128xf32>
    %120 = arith.maximumf %117, %119 : vector<32x128xf32>
    %c0_41 = arith.constant 0 : index
    %c0_42 = arith.constant 0 : index
    %121 = vector.load %arg7[%c0_41, %c0_42] : memref<32x1xf32, #tpu.memory_space<vmem>>, vector<32x1xf32>
    %122 = vector.broadcast %121 : vector<32x1xf32> to vector<32x128xf32>
    %123 = arith.mulf %120, %122 : vector<32x128xf32>
    %cst_43 = arith.constant dense<0.000000e+00> : vector<128xf32>
    %124 = vector.multi_reduction <add>, %123, %cst_43 [0] : vector<32x128xf32> to vector<128xf32>
    %125 = vector.shape_cast %124 : vector<128xf32> to vector<1x128xf32>
    %c0_44 = arith.constant 0 : index
    %c0_45 = arith.constant 0 : index
    %126 = vector.load %arg8[%c0_44, %c0_45] : memref<1x1xf32, #tpu.memory_space<vmem>>, vector<1x1xf32>
    %127 = vector.broadcast %126 : vector<1x1xf32> to vector<1x128xf32>
    %128 = arith.addf %125, %127 : vector<1x128xf32>
    %c0_46 = arith.constant 0 : index
    %c0_47 = arith.constant 0 : index
    %129 = vector.load %arg9[%c0_46, %c0_47] : memref<1x128xf32, #tpu.memory_space<vmem>>, vector<1x128xf32>
    tpu.vector_store %arg9[%c0_46, %c0_47], %128 {strides = array<i32>} : memref<1x128xf32, #tpu.memory_space<vmem>>, vector<1x128xf32>,
    return
  }
}

</mosaic_0001>

<llo_original>
// kernel: tpu_custom_call.1
$region0: #{tpu_custom_call.1}
  #allocation0 [shape = 'u32[]', space=smem, size = 0x4, offset = 0x4, fixed_abs, tag = 'smem constant byte address 0x4 - core index']
  #allocation1 [shape = 'u32[144,128]{1,0:T(1,128)}', space=vmem, size = 0x12000, scoped, tag = 'internal scratch']
  #allocation2 [shape = 'f32[1,1]{1,0:T(1,128)S(1)}', space=vmem, size = 0x200, scoped, tag = 'scoped memory for tpu_custom_call.1']
  %s0 = inlined_call_operand.vmem [shape: f32[2,128], index: 0, kind: input, shape index: {}]
  %s1 = inlined_call_operand.vmem [shape: f32[64,2], index: 1, kind: input, shape index: {}]
  %s2 = inlined_call_operand.vmem [shape: f32[64,1], index: 2, kind: input, shape index: {}]
  %s3 = inlined_call_operand.vmem [shape: f32[64,1], index: 3, kind: input, shape index: {}]
  %s4 = inlined_call_operand.vmem [shape: f32[32,64], index: 4, kind: input, shape index: {}]
  %s5 = inlined_call_operand.vmem [shape: f32[32,1], index: 5, kind: input, shape index: {}]
  %s6 = inlined_call_operand.vmem [shape: f32[32,1], index: 6, kind: input, shape index: {}]
  %s7 = inlined_call_operand.vmem [shape: f32[32,1], index: 7, kind: input, shape index: {}]
  %s8 = inlined_call_operand.<no memory space> [shape: f32[1,1], index: 8, kind: input, shape index: {}]
  %s9 = inlined_call_operand.hbm [shape: f32[1,128], index: 9, kind: output, shape index: {}]
  %s10 = sld [smem:[#allocation0]]
  $region46: #{tpu_custom_call.1} parent=0
    _
  %s12 = ssub.s32 1, %s10
  %s13 = scalar_select 0, %s12, %s10
  %v14 = vstv %s8
  %15 = vst [vmem:[#allocation2] sm:$0x1] %v14
  $region1: #{tpu_custom_call.1} parent=0
    #allocation3 [shape = 'u8[512]{0}', space=vmem, size = 0x400, scoped, tag = 'output window, operand 0, single buffered']
    #allocation4 [shape = 's32[1]{0}', space=sflag, size = 0x4, scoped, tag = 'scoped memory for tpu_custom_call.1']
    %16 = vsyncpa [#allocation4], 0
    // Predicated region
    $region2: #{tpu_custom_call.1} parent=1 // pred_check
      _
    $region3: #{tpu_custom_call.1} parent=1 // pred_check_branch
      %18 = sbr.rel (0) target = $region5
    $region4: #{tpu_custom_call.1} parent=1 // pred_region
      _
    $region5: #{tpu_custom_call.1} parent=1 // pred_fallthru
      _
    // Predicated region
    $region6: #{tpu_custom_call.1} parent=1 // pred_check
      _
    $region7: #{tpu_custom_call.1} parent=1 // pred_check_branch
      %20 = sbr.rel (0) target = $region9
    $region8: #{tpu_custom_call.1} parent=1 // pred_region
      _
    $region9: #{tpu_custom_call.1} parent=1 // pred_fallthru
      _
    // Predicated region
    $region10: #{tpu_custom_call.1} parent=1 // pred_check
      _
    $region11: #{tpu_custom_call.1} parent=1 // pred_check_branch
      %22 = sbr.rel (0) target = $region13
    $region12: #{tpu_custom_call.1} parent=1 // pred_region
      _
    $region13: #{tpu_custom_call.1} parent=1 // pred_fallthru
      _
    // Predicated region
    $region14: #{tpu_custom_call.1} parent=1 // pred_check
      _
    $region15: #{tpu_custom_call.1} parent=1 // pred_check_branch
      %24 = sbr.rel (0) target = $region17
    $region16: #{tpu_custom_call.1} parent=1 // pred_region
      _
    $region17: #{tpu_custom_call.1} parent=1 // pred_fallthru
      _
    // Predicated region
    $region18: #{tpu_custom_call.1} parent=1 // pred_check
      _
    $region19: #{tpu_custom_call.1} parent=1 // pred_check_branch
      %26 = sbr.rel (0) target = $region21
    $region20: #{tpu_custom_call.1} parent=1 // pred_region
      _
    $region21: #{tpu_custom_call.1} parent=1 // pred_fallthru
      _
    // Predicated region
    $region22: #{tpu_custom_call.1} parent=1 // pred_check
      _
    $region23: #{tpu_custom_call.1} parent=1 // pred_check_branch
      %28 = sbr.rel (0) target = $region25
    $region24: #{tpu_custom_call.1} parent=1 // pred_region
      _
    $region25: #{tpu_custom_call.1} parent=1 // pred_fallthru
      _
    // Predicated region
    $region26: #{tpu_custom_call.1} parent=1 // pred_check
      _
    $region27: #{tpu_custom_call.1} parent=1 // pred_check_branch
      %30 = sbr.rel (0) target = $region29
    $region28: #{tpu_custom_call.1} parent=1 // pred_region
      _
    $region29: #{tpu_custom_call.1} parent=1 // pred_fallthru
      _
    // Predicated region
    $region30: #{tpu_custom_call.1} parent=1 // pred_check
      _
    $region31: #{tpu_custom_call.1} parent=1 // pred_check_branch
      %32 = sbr.rel (0) target = $region33
    $region32: #{tpu_custom_call.1} parent=1 // pred_region
      _
    $region33: #{tpu_custom_call.1} parent=1 // pred_fallthru
      _
    // Predicated region
    $region34: #{tpu_custom_call.1} parent=1 // pred_check
      _
    $region35: #{tpu_custom_call.1} parent=1 // pred_check_branch
      %34 = sbr.rel (0) target = $region37
    $region36: #{tpu_custom_call.1} parent=1 // pred_region
      _
    $region37: #{tpu_custom_call.1} parent=1 // pred_fallthru
      _
    %v35 = vld [vmem:[%s0] sm:$0x3]
    %v36 = vld [vmem:[%s1] sm:$0xff]
    %v37 = vld [vmem:[%s1 + $0x8] sm:$0xff]
    %v38 = vld [vmem:[%s1 + $0x10] sm:$0xff]
    %v39 = vld [vmem:[%s1 + $0x18] sm:$0xff]
    %v40 = vld [vmem:[%s1 + $0x20] sm:$0xff]
    %v41 = vld [vmem:[%s1 + $0x28] sm:$0xff]
    %v42 = vld [vmem:[%s1 + $0x30] sm:$0xff]
    %v43 = vld [vmem:[%s1 + $0x38] sm:$0xff]
    %vm44 = vcmask 1040384
    %v45 = vsel %vm44, %v35, 0.0
    %46 = vadd.xlane.f32.xlu0 %v45
    %v47 = vpop.xlane.xlu0 %46
    %v48 = vmul.f32 %v47, 0.125
    %vm49 = vcmask 1041409
    %v50 = vsel %vm49, %v35, 0.0
    %51 = vadd.xlane.f32.xlu0 %v50
    %v52 = vpop.xlane.xlu0 %51
    %v53 = vmul.f32 %v52, 0.125
    %v54 = vmul.f32 %v35, %v35
    %v55 = vsel %vm44, %v54, 0.0
    %56 = vadd.xlane.f32.xlu0 %v55
    %v57 = vpop.xlane.xlu0 %56
    %v58 = vmul.f32 %v57, 0.125
    %v59 = vmul.f32 %v48, %v48
    %v60 = vsub.f32 %v58, %v59
    %v61 = vsel %vm49, %v54, 0.0
    %62 = vadd.xlane.f32.xlu0 %v61
    %v63 = vpop.xlane.xlu0 %62
    %v64 = vmul.f32 %v63, 0.125
    %v65 = vmul.f32 %v53, %v53
    %v66 = vsub.f32 %v64, %v65
    %v68 = vrot.slane %v35, 1
    %v70 = vmul.f32 %v35, %v68
    %v71 = vsel %vm44, %v70, 0.0
    %72 = vadd.xlane.f32.xlu0 %v71
    %v73 = vpop.xlane.xlu0 %72
    %v74 = vmul.f32 %v73, 0.125
    %v76 = vrot.slane %v53, 1
    %v78 = vmul.f32 %v48, %v76
    %v79 = vsub.f32 %v74, %v78
    %v80 = vlaneseq
    %v81 = vshrl.u32 %v80, 7
    %v82 = vsub.s32 0, %v81
    %v83 = vrot.slane %v48, %v82
    %v84 = vmul.f32 %v36, %v83
    %v85 = vmul.f32 %v37, %v83
    %v86 = vmul.f32 %v38, %v83
    %v87 = vmul.f32 %v39, %v83
    %v88 = vmul.f32 %v40, %v83
    %v89 = vmul.f32 %v41, %v83
    %v90 = vmul.f32 %v42, %v83
    %v91 = vmul.f32 %v43, %v83
    %v92 = vlaneseq
    %v93 = vshrl.u32 %v92, 7
    %v94 = vsub.s32 1, %v93
    %v95 = vrot.slane %v53, %v94
    %v96 = vmul.f32 %v36, %v95
    %v97 = vmul.f32 %v37, %v95
    %v98 = vmul.f32 %v38, %v95
    %v99 = vmul.f32 %v39, %v95
    %v100 = vmul.f32 %v40, %v95
    %v101 = vmul.f32 %v41, %v95
    %v102 = vmul.f32 %v42, %v95
    %v103 = vmul.f32 %v43, %v95
    %112 = vrot.lane.b32.xlu0 %v96, 127
    %v113 = vpop.permute.xlu0 %112
    %114 = vrot.lane.b32.xlu0 %v97, 127
    %v115 = vpop.permute.xlu0 %114
    %116 = vrot.lane.b32.xlu0 %v98, 127
    %v117 = vpop.permute.xlu0 %116
    %118 = vrot.lane.b32.xlu0 %v99, 127
    %v119 = vpop.permute.xlu0 %118
    %120 = vrot.lane.b32.xlu0 %v100, 127
    %v121 = vpop.permute.xlu0 %120
    %122 = vrot.lane.b32.xlu0 %v101, 127
    %v123 = vpop.permute.xlu0 %122
    %124 = vrot.lane.b32.xlu0 %v102, 127
    %v125 = vpop.permute.xlu0 %124
    %126 = vrot.lane.b32.xlu0 %v103, 127
    %v127 = vpop.permute.xlu0 %126
    %v136 = vadd.f32 %v84, %v113
    %v137 = vadd.f32 %v85, %v115
    %v138 = vadd.f32 %v86, %v117
    %v139 = vadd.f32 %v87, %v119
    %v140 = vadd.f32 %v88, %v121
    %v141 = vadd.f32 %v89, %v123
    %v142 = vadd.f32 %v90, %v125
    %v143 = vadd.f32 %v91, %v127
    %v144 = vmul.f32 %v36, %v36
    %v145 = vmul.f32 %v37, %v37
    %v146 = vmul.f32 %v38, %v38
    %v147 = vmul.f32 %v39, %v39
    %v148 = vmul.f32 %v40, %v40
    %v149 = vmul.f32 %v41, %v41
    %v150 = vmul.f32 %v42, %v42
    %v151 = vmul.f32 %v43, %v43
    %v152 = vlaneseq
    %v153 = vshrl.u32 %v152, 7
    %v154 = vsub.s32 0, %v153
    %v155 = vrot.slane %v60, %v154
    %v156 = vmul.f32 %v144, %v155
    %v157 = vmul.f32 %v145, %v155
    %v158 = vmul.f32 %v146, %v155
    %v159 = vmul.f32 %v147, %v155
    %v160 = vmul.f32 %v148, %v155
    %v161 = vmul.f32 %v149, %v155
    %v162 = vmul.f32 %v150, %v155
    %v163 = vmul.f32 %v151, %v155
    %172 = vrot.lane.b32.xlu0 %v36, 127
    %v173 = vpop.permute.xlu0 %172
    %174 = vrot.lane.b32.xlu0 %v37, 127
    %v175 = vpop.permute.xlu0 %174
    %176 = vrot.lane.b32.xlu0 %v38, 127
    %v177 = vpop.permute.xlu0 %176
    %178 = vrot.lane.b32.xlu0 %v39, 127
    %v179 = vpop.permute.xlu0 %178
    %180 = vrot.lane.b32.xlu0 %v40, 127
    %v181 = vpop.permute.xlu0 %180
    %182 = vrot.lane.b32.xlu0 %v41, 127
    %v183 = vpop.permute.xlu0 %182
    %184 = vrot.lane.b32.xlu0 %v42, 127
    %v185 = vpop.permute.xlu0 %184
    %186 = vrot.lane.b32.xlu0 %v43, 127
    %v187 = vpop.permute.xlu0 %186
    %v196 = vmul.f32 %v36, %v173
    %v197 = vmul.f32 %v37, %v175
    %v198 = vmul.f32 %v38, %v177
    %v199 = vmul.f32 %v39, %v179
    %v200 = vmul.f32 %v40, %v181
    %v201 = vmul.f32 %v41, %v183
    %v202 = vmul.f32 %v42, %v185
    %v203 = vmul.f32 %v43, %v187
    %v204 = vmul.f32 %v196, 2.0
    %v205 = vmul.f32 %v197, 2.0
    %v206 = vmul.f32 %v198, 2.0
    %v207 = vmul.f32 %v199, 2.0
    %v208 = vmul.f32 %v200, 2.0
    %v209 = vmul.f32 %v201, 2.0
    %v210 = vmul.f32 %v202, 2.0
    %v211 = vmul.f32 %v203, 2.0
    %v212 = vlaneseq
    %v213 = vshrl.u32 %v212, 7
    %v214 = vsub.s32 0, %v213
    %v215 = vrot.slane %v79, %v214
    %v216 = vmul.f32 %v204, %v215
    %v217 = vmul.f32 %v205, %v215
    %v218 = vmul.f32 %v206, %v215
    %v219 = vmul.f32 %v207, %v215
    %v220 = vmul.f32 %v208, %v215
    %v221 = vmul.f32 %v209, %v215
    %v222 = vmul.f32 %v210, %v215
    %v223 = vmul.f32 %v211, %v215
    %v224 = vadd.f32 %v156, %v216
    %v225 = vadd.f32 %v157, %v217
    %v226 = vadd.f32 %v158, %v218
    %v227 = vadd.f32 %v159, %v219
    %v228 = vadd.f32 %v160, %v220
    %v229 = vadd.f32 %v161, %v221
    %v230 = vadd.f32 %v162, %v222
    %v231 = vadd.f32 %v163, %v223
    %v232 = vlaneseq
    %v233 = vshrl.u32 %v232, 7
    %v234 = vsub.s32 1, %v233
    %v235 = vrot.slane %v66, %v234
    %v236 = vmul.f32 %v144, %v235
    %v237 = vmul.f32 %v145, %v235
    %v238 = vmul.f32 %v146, %v235
    %v239 = vmul.f32 %v147, %v235
    %v240 = vmul.f32 %v148, %v235
    %v241 = vmul.f32 %v149, %v235
    %v242 = vmul.f32 %v150, %v235
    %v243 = vmul.f32 %v151, %v235
    %252 = vrot.lane.b32.xlu0 %v236, 127
    %v253 = vpop.permute.xlu0 %252
    %254 = vrot.lane.b32.xlu0 %v237, 127
    %v255 = vpop.permute.xlu0 %254
    %256 = vrot.lane.b32.xlu0 %v238, 127
    %v257 = vpop.permute.xlu0 %256
    %258 = vrot.lane.b32.xlu0 %v239, 127
    %v259 = vpop.permute.xlu0 %258
    %260 = vrot.lane.b32.xlu0 %v240, 127
    %v261 = vpop.permute.xlu0 %260
    %262 = vrot.lane.b32.xlu0 %v241, 127
    %v263 = vpop.permute.xlu0 %262
    %264 = vrot.lane.b32.xlu0 %v242, 127
    %v265 = vpop.permute.xlu0 %264
    %266 = vrot.lane.b32.xlu0 %v243, 127
    %v267 = vpop.permute.xlu0 %266
    %v276 = vadd.f32 %v224, %v253
    %v277 = vadd.f32 %v225, %v255
    %v278 = vadd.f32 %v226, %v257
    %v279 = vadd.f32 %v227, %v259
    %v280 = vadd.f32 %v228, %v261
    %v281 = vadd.f32 %v229, %v263
    %v282 = vadd.f32 %v230, %v265
    %v283 = vadd.f32 %v231, %v267
    %v284 = vmax.f32 %v276, 0.0
    %v285 = vmax.f32 %v277, 0.0
    %v286 = vmax.f32 %v278, 0.0
    %v287 = vmax.f32 %v279, 0.0
    %v288 = vmax.f32 %v280, 0.0
    %v289 = vmax.f32 %v281, 0.0
    %v290 = vmax.f32 %v282, 0.0
    %v291 = vmax.f32 %v283, 0.0
    %v292 = vld [vmem:[%s2] sm:$0xff]
    %v293 = vld [vmem:[%s2 + $0x8] sm:$0xff]
    %v294 = vld [vmem:[%s2 + $0x10] sm:$0xff]
    %v295 = vld [vmem:[%s2 + $0x18] sm:$0xff]
    %v296 = vld [vmem:[%s2 + $0x20] sm:$0xff]
    %v297 = vld [vmem:[%s2 + $0x28] sm:$0xff]
    %v298 = vld [vmem:[%s2 + $0x30] sm:$0xff]
    %v299 = vld [vmem:[%s2 + $0x38] sm:$0xff]
    %v300 = vadd.f32 %v284, 1e-05
    %v301 = vadd.f32 %v285, 1e-05
    %v302 = vadd.f32 %v286, 1e-05
    %v303 = vadd.f32 %v287, 1e-05
    %v304 = vadd.f32 %v288, 1e-05
    %v305 = vadd.f32 %v289, 1e-05
    %v306 = vadd.f32 %v290, 1e-05
    %v307 = vadd.f32 %v291, 1e-05
    %v308 = vrsqrt.pop %v300
    %v309 = vrsqrt.pop %v301
    %v310 = vrsqrt.pop %v302
    %v311 = vrsqrt.pop %v303
    %v312 = vrsqrt.pop %v304
    %v313 = vrsqrt.pop %v305
    %v314 = vrsqrt.pop %v306
    %v315 = vrsqrt.pop %v307
    %v316 = vmul.f32 %v292, %v308
    %v317 = vmul.f32 %v293, %v309
    %v318 = vmul.f32 %v294, %v310
    %v319 = vmul.f32 %v295, %v311
    %v320 = vmul.f32 %v296, %v312
    %v321 = vmul.f32 %v297, %v313
    %v322 = vmul.f32 %v298, %v314
    %v323 = vmul.f32 %v299, %v315
    %v324 = vmul.f32 %v36, %v316
    %v325 = vmul.f32 %v37, %v317
    %v326 = vmul.f32 %v38, %v318
    %v327 = vmul.f32 %v39, %v319
    %v328 = vmul.f32 %v40, %v320
    %v329 = vmul.f32 %v41, %v321
    %v330 = vmul.f32 %v42, %v322
    %v331 = vmul.f32 %v43, %v323
    %340 = vrot.lane.b32.xlu0 %v316, 1
    %v341 = vpop.permute.xlu0 %340
    %342 = vrot.lane.b32.xlu0 %v317, 1
    %v343 = vpop.permute.xlu0 %342
    %344 = vrot.lane.b32.xlu0 %v318, 1
    %v345 = vpop.permute.xlu0 %344
    %346 = vrot.lane.b32.xlu0 %v319, 1
    %v347 = vpop.permute.xlu0 %346
    %348 = vrot.lane.b32.xlu0 %v320, 1
    %v349 = vpop.permute.xlu0 %348
    %350 = vrot.lane.b32.xlu0 %v321, 1
    %v351 = vpop.permute.xlu0 %350
    %352 = vrot.lane.b32.xlu0 %v322, 1
    %v353 = vpop.permute.xlu0 %352
    %354 = vrot.lane.b32.xlu0 %v323, 1
    %v355 = vpop.permute.xlu0 %354
    %v364 = vmul.f32 %v36, %v341
    %v365 = vmul.f32 %v37, %v343
    %v366 = vmul.f32 %v38, %v345
    %v367 = vmul.f32 %v39, %v347
    %v368 = vmul.f32 %v40, %v349
    %v369 = vmul.f32 %v41, %v351
    %v370 = vmul.f32 %v42, %v353
    %v371 = vmul.f32 %v43, %v355
    %v372 = vld [vmem:[%s3] sm:$0xff]
    %v373 = vld [vmem:[%s3 + $0x8] sm:$0xff]
    %v374 = vld [vmem:[%s3 + $0x10] sm:$0xff]
    %v375 = vld [vmem:[%s3 + $0x18] sm:$0xff]
    %v376 = vld [vmem:[%s3 + $0x20] sm:$0xff]
    %v377 = vld [vmem:[%s3 + $0x28] sm:$0xff]
    %v378 = vld [vmem:[%s3 + $0x30] sm:$0xff]
    %v379 = vld [vmem:[%s3 + $0x38] sm:$0xff]
    %v380 = vmul.f32 %v136, %v316
    %v381 = vmul.f32 %v137, %v317
    %v382 = vmul.f32 %v138, %v318
    %v383 = vmul.f32 %v139, %v319
    %v384 = vmul.f32 %v140, %v320
    %v385 = vmul.f32 %v141, %v321
    %v386 = vmul.f32 %v142, %v322
    %v387 = vmul.f32 %v143, %v323
    %v388 = vsub.f32 %v372, %v380
    %v389 = vsub.f32 %v373, %v381
    %v390 = vsub.f32 %v374, %v382
    %v391 = vsub.f32 %v375, %v383
    %v392 = vsub.f32 %v376, %v384
    %v393 = vsub.f32 %v377, %v385
    %v394 = vsub.f32 %v378, %v386
    %v395 = vsub.f32 %v379, %v387
    %397 = vset.pattern.permute.xlu0 0
    %398 = vperm.xlu0 %397, %v324
    %v399 = vpop.permute.xlu0 %398
    %402 = vset.pattern.permute.xlu0 0
    %403 = vperm.xlu0 %402, %v325
    %v404 = vpop.permute.xlu0 %403
    %407 = vset.pattern.permute.xlu0 0
    %408 = vperm.xlu0 %407, %v326
    %v409 = vpop.permute.xlu0 %408
    %412 = vset.pattern.permute.xlu0 0
    %413 = vperm.xlu0 %412, %v327
    %v414 = vpop.permute.xlu0 %413
    %417 = vset.pattern.permute.xlu0 0
    %418 = vperm.xlu0 %417, %v328
    %v419 = vpop.permute.xlu0 %418
    %422 = vset.pattern.permute.xlu0 0
    %423 = vperm.xlu0 %422, %v329
    %v424 = vpop.permute.xlu0 %423
    %427 = vset.pattern.permute.xlu0 0
    %428 = vperm.xlu0 %427, %v330
    %v429 = vpop.permute.xlu0 %428
    %432 = vset.pattern.permute.xlu0 0
    %433 = vperm.xlu0 %432, %v331
    %v434 = vpop.permute.xlu0 %433
    %v436 = vlaneseq
    %v437 = vshrl.u32 %v436, 7
    %v438 = vsub.s32 0, %v437
    %v439 = vrot.slane %v35, %v438
    %v440 = vmul.f32 %v399, %v439
    %v441 = vmul.f32 %v404, %v439
    %v442 = vmul.f32 %v409, %v439
    %v443 = vmul.f32 %v414, %v439
    %v444 = vmul.f32 %v419, %v439
    %v445 = vmul.f32 %v424, %v439
    %v446 = vmul.f32 %v429, %v439
    %v447 = vmul.f32 %v434, %v439
    %449 = vset.pattern.permute.xlu0 1
    %450 = vperm.xlu0 %449, %v364
    %v451 = vpop.permute.xlu0 %450
    %454 = vset.pattern.permute.xlu0 1
    %455 = vperm.xlu0 %454, %v365
    %v456 = vpop.permute.xlu0 %455
    %459 = vset.pattern.permute.xlu0 1
    %460 = vperm.xlu0 %459, %v366
    %v461 = vpop.permute.xlu0 %460
    %464 = vset.pattern.permute.xlu0 1
    %465 = vperm.xlu0 %464, %v367
    %v466 = vpop.permute.xlu0 %465
    %469 = vset.pattern.permute.xlu0 1
    %470 = vperm.xlu0 %469, %v368
    %v471 = vpop.permute.xlu0 %470
    %474 = vset.pattern.permute.xlu0 1
    %475 = vperm.xlu0 %474, %v369
    %v476 = vpop.permute.xlu0 %475
    %479 = vset.pattern.permute.xlu0 1
    %480 = vperm.xlu0 %479, %v370
    %v481 = vpop.permute.xlu0 %480
    %484 = vset.pattern.permute.xlu0 1
    %485 = vperm.xlu0 %484, %v371
    %v486 = vpop.permute.xlu0 %485
    %v488 = vlaneseq
    %v489 = vshrl.u32 %v488, 7
    %v490 = vsub.s32 1, %v489
    %v491 = vrot.slane %v35, %v490
    %v492 = vmul.f32 %v451, %v491
    %v493 = vmul.f32 %v456, %v491
    %v494 = vmul.f32 %v461, %v491
    %v495 = vmul.f32 %v466, %v491
    %v496 = vmul.f32 %v471, %v491
    %v497 = vmul.f32 %v476, %v491
    %v498 = vmul.f32 %v481, %v491
    %v499 = vmul.f32 %v486, %v491
    %v500 = vadd.f32 %v440, %v492
    %v501 = vadd.f32 %v441, %v493
    %v502 = vadd.f32 %v442, %v494
    %v503 = vadd.f32 %v443, %v495
    %v504 = vadd.f32 %v444, %v496
    %v505 = vadd.f32 %v445, %v497
    %v506 = vadd.f32 %v446, %v498
    %v507 = vadd.f32 %v447, %v499
    %509 = vset.pattern.permute.xlu0 0
    %510 = vperm.xlu0 %509, %v388
    %v511 = vpop.permute.xlu0 %510
    %514 = vset.pattern.permute.xlu0 0
    %515 = vperm.xlu0 %514, %v389
    %v516 = vpop.permute.xlu0 %515
    %519 = vset.pattern.permute.xlu0 0
    %520 = vperm.xlu0 %519, %v390
    %v521 = vpop.permute.xlu0 %520
    %524 = vset.pattern.permute.xlu0 0
    %525 = vperm.xlu0 %524, %v391
    %v526 = vpop.permute.xlu0 %525
    %529 = vset.pattern.permute.xlu0 0
    %530 = vperm.xlu0 %529, %v392
    %v531 = vpop.permute.xlu0 %530
    %534 = vset.pattern.permute.xlu0 0
    %535 = vperm.xlu0 %534, %v393
    %v536 = vpop.permute.xlu0 %535
    %539 = vset.pattern.permute.xlu0 0
    %540 = vperm.xlu0 %539, %v394
    %v541 = vpop.permute.xlu0 %540
    %544 = vset.pattern.permute.xlu0 0
    %545 = vperm.xlu0 %544, %v395
    %v546 = vpop.permute.xlu0 %545
    %v548 = vadd.f32 %v500, %v511
    %v549 = vadd.f32 %v501, %v516
    %v550 = vadd.f32 %v502, %v521
    %v551 = vadd.f32 %v503, %v526
    %v552 = vadd.f32 %v504, %v531
    %v553 = vadd.f32 %v505, %v536
    %v554 = vadd.f32 %v506, %v541
    %v555 = vadd.f32 %v507, %v546
    %v556 = vmul.f32 %v548, 0.01
    %v557 = vmul.f32 %v549, 0.01
    %v558 = vmul.f32 %v550, 0.01
    %v559 = vmul.f32 %v551, 0.01
    %v560 = vmul.f32 %v552, 0.01
    %v561 = vmul.f32 %v553, 0.01
    %v562 = vmul.f32 %v554, 0.01
    %v563 = vmul.f32 %v555, 0.01
    %v564 = vmax.f32 %v548, %v556
    %v565 = vmax.f32 %v549, %v557
    %v566 = vmax.f32 %v550, %v558
    %v567 = vmax.f32 %v551, %v559
    %v568 = vmax.f32 %v552, %v560
    %v569 = vmax.f32 %v553, %v561
    %v570 = vmax.f32 %v554, %v562
    %v571 = vmax.f32 %v555, %v563
    %572 = vadd.xlane.f32.xlu0 %v564
    %v573 = vpop.xlane.xlu0 %572
    %574 = vadd.xlane.f32.xlu0 %v565
    %v575 = vpop.xlane.xlu0 %574
    %576 = vadd.xlane.f32.xlu0 %v566
    %v577 = vpop.xlane.xlu0 %576
    %578 = vadd.xlane.f32.xlu0 %v567
    %v579 = vpop.xlane.xlu0 %578
    %580 = vadd.xlane.f32.xlu0 %v568
    %v581 = vpop.xlane.xlu0 %580
    %582 = vadd.xlane.f32.xlu0 %v569
    %v583 = vpop.xlane.xlu0 %582
    %584 = vadd.xlane.f32.xlu0 %v570
    %v585 = vpop.xlane.xlu0 %584
    %586 = vadd.xlane.f32.xlu0 %v571
    %v587 = vpop.xlane.xlu0 %586
    %588 = vmatprep.subr.mxu0 0.0
    %589 = vmatpush1.xpose.msra.mxu0 0.0
    %590 = vmatprep.subr.mxu0 0.0
    %591 = vmatpush1.xpose.msra.mxu0 0.0
    %592 = vmatprep.subr.mxu0 0.0
    %593 = vmatpush1.xpose.msra.mxu0 0.0
    %594 = vmatprep.subr.mxu0 0.0
    %595 = vmatpush1.xpose.msra.mxu0 0.0
    %596 = vmatprep.subr.mxu0 0.0
    %597 = vmatpush1.xpose.msra.mxu0 0.0
    %598 = vmatprep.subr.mxu0 0.0
    %599 = vmatpush1.xpose.msra.mxu0 0.0
    %600 = vmatprep.subr.mxu0 0.0
    %601 = vmatpush1.xpose.msra.mxu0 0.0
    %602 = vmatprep.subr.mxu0 0.0
    %603 = vmatpush1.xpose.msra.mxu0 0.0
    %604 = vmatprep.subr.mxu0 0.0
    %605 = vmatpush1.xpose.msra.mxu0 %v571
    %606 = vmatprep.subr.mxu0 0.0
    %607 = vmatpush1.xpose.msra.mxu0 %v570
    %608 = vmatprep.subr.mxu0 0.0
    %609 = vmatpush1.xpose.msra.mxu0 %v569
    %610 = vmatprep.subr.mxu0 0.0
    %611 = vmatpush1.xpose.msra.mxu0 %v568
    %612 = vmatprep.subr.mxu0 0.0
    %613 = vmatpush1.xpose.msra.mxu0 %v567
    %614 = vmatprep.subr.mxu0 0.0
    %615 = vmatpush1.xpose.msra.mxu0 %v566
    %616 = vmatprep.subr.mxu0 0.0
    %617 = vmatpush1.xpose.msra.mxu0 %v565
    %618 = vmatprep.subr.mxu0 0.0
    %619 = vmatpush1.xpose.msra.mxu0 %v564
    %620 = vmatprep.subr.mxu0 0.0
    %621 = vmatpush2.xpose.msra.mxu0 0.0
    %622 = vmatprep.subr.mxu0 0.0
    %623 = vmatpush2.xpose.msra.mxu0 0.0
    %624 = vmatprep.subr.mxu0 0.0
    %625 = vmatpush2.xpose.msra.mxu0 0.0
    %626 = vmatprep.subr.mxu0 0.0
    %627 = vmatpush2.xpose.msra.mxu0 0.0
    %628 = vmatprep.subr.mxu0 0.0
    %629 = vmatpush2.xpose.msra.mxu0 0.0
    %630 = vmatprep.subr.mxu0 0.0
    %631 = vmatpush2.xpose.msra.mxu0 0.0
    %632 = vmatprep.subr.mxu0 0.0
    %633 = vmatpush2.xpose.msra.mxu0 0.0
    %634 = vmatprep.subr.mxu0 0.0
    %635 = vmatpush2.xpose.msra.mxu0 0.0
    %636 = vmatprep.subr.mxu0 0.0
    %637 = vmatpush2.xpose.msra.mxu0 0.0
    %638 = vmatprep.subr.mxu0 0.0
    %639 = vmatpush2.xpose.msra.mxu0 0.0
    %640 = vmatprep.subr.mxu0 0.0
    %641 = vmatpush2.xpose.msra.mxu0 0.0
    %642 = vmatprep.subr.mxu0 0.0
    %643 = vmatpush2.xpose.msra.mxu0 0.0
    %644 = vmatprep.subr.mxu0 0.0
    %645 = vmatpush2.xpose.msra.mxu0 0.0
    %646 = vmatprep.subr.mxu0 0.0
    %647 = vmatpush2.xpose.msra.mxu0 0.0
    %648 = vmatprep.subr.mxu0 0.0
    %649 = vmatpush2.xpose.msra.mxu0 0.0
    %650 = vmatprep.subr.mxu0 0.0
    %651 = vmatpush2.xpose.msra.mxu0 0.0
    %652 = vmatprep.mubr.f32.mxu0 0.0
    %653 = vmatmul.mubr.f32.gmra.mxu0 %v564
    %v654 = vpop.f32.mrf.mxu0
    %v655 = vadd.f32 0.0, %v654
    %v656 = vpop.f32.mrf.mxu0
    %657 = vmatprep.mubr.f32.mxu0 0.0
    %658 = vmatmul.mubr.f32.gmra.mxu0 %v565
    %v659 = vpop.f32.mrf.mxu0
    %v660 = vadd.f32 0.0, %v659
    %v661 = vpop.f32.mrf.mxu0
    %662 = vmatprep.mubr.f32.mxu0 0.0
    %663 = vmatmul.mubr.f32.gmra.mxu0 %v566
    %v664 = vpop.f32.mrf.mxu0
    %v665 = vadd.f32 0.0, %v664
    %v666 = vpop.f32.mrf.mxu0
    %667 = vmatprep.mubr.f32.mxu0 0.0
    %668 = vmatmul.mubr.f32.gmra.mxu0 %v567
    %v669 = vpop.f32.mrf.mxu0
    %v670 = vadd.f32 0.0, %v669
    %v671 = vpop.f32.mrf.mxu0
    %672 = vmatprep.mubr.f32.mxu0 0.0
    %673 = vmatmul.mubr.f32.gmra.mxu0 %v568
    %v674 = vpop.f32.mrf.mxu0
    %v675 = vadd.f32 0.0, %v674
    %v676 = vpop.f32.mrf.mxu0
    %677 = vmatprep.mubr.f32.mxu0 0.0
    %678 = vmatmul.mubr.f32.gmra.mxu0 %v569
    %v679 = vpop.f32.mrf.mxu0
    %v680 = vadd.f32 0.0, %v679
    %v681 = vpop.f32.mrf.mxu0
    %682 = vmatprep.mubr.f32.mxu0 0.0
    %683 = vmatmul.mubr.f32.gmra.mxu0 %v570
    %v684 = vpop.f32.mrf.mxu0
    %v685 = vadd.f32 0.0, %v684
    %v686 = vpop.f32.mrf.mxu0
    %687 = vmatprep.mubr.f32.mxu0 0.0
    %688 = vmatmul.mubr.f32.gmra.mxu0 %v571
    %v689 = vpop.f32.mrf.mxu0
    %v690 = vadd.f32 0.0, %v689
    %v691 = vpop.f32.mrf.mxu0
    %692 = vdwg.mxu0
    %v693 = vld [vmem:[%s4] sm:$0xff]
    %v694 = vld [vmem:[%s4 + $0x8] sm:$0xff]
    %v695 = vld [vmem:[%s4 + $0x10] sm:$0xff]
    %v696 = vld [vmem:[%s4 + $0x18] sm:$0xff]
    %v697 = vld [vmem:[%s5] sm:$0xff]
    %v698 = vld [vmem:[%s5 + $0x8] sm:$0xff]
    %v699 = vld [vmem:[%s5 + $0x10] sm:$0xff]
    %v700 = vld [vmem:[%s5 + $0x18] sm:$0xff]
    %v701 = vld [vmem:[%s6] sm:$0xff]
    %v702 = vld [vmem:[%s6 + $0x8] sm:$0xff]
    %v703 = vld [vmem:[%s6 + $0x10] sm:$0xff]
    %v704 = vld [vmem:[%s6 + $0x18] sm:$0xff]
    %v705 = vmul.f32 %v388, 0.01
    %v706 = vmul.f32 %v389, 0.01
    %v707 = vmul.f32 %v390, 0.01
    %v708 = vmul.f32 %v391, 0.01
    %v709 = vmul.f32 %v392, 0.01
    %v710 = vmul.f32 %v393, 0.01
    %v711 = vmul.f32 %v394, 0.01
    %v712 = vmul.f32 %v395, 0.01
    %v713 = vmax.f32 %v388, %v705
    %v714 = vmax.f32 %v389, %v706
    %v715 = vmax.f32 %v390, %v707
    %v716 = vmax.f32 %v391, %v708
    %v717 = vmax.f32 %v392, %v709
    %v718 = vmax.f32 %v393, %v710
    %v719 = vmax.f32 %v394, %v711
    %v720 = vmax.f32 %v395, %v712
    %v721 = vmul.f32 %v713, 120.0
    %v722 = vmul.f32 %v714, 120.0
    %v723 = vmul.f32 %v715, 120.0
    %v724 = vmul.f32 %v716, 120.0
    %v725 = vmul.f32 %v717, 120.0
    %v726 = vmul.f32 %v718, 120.0
    %v727 = vmul.f32 %v719, 120.0
    %v728 = vmul.f32 %v720, 120.0
    %v729 = vsub.f32 %v573, %v721
    %v730 = vsub.f32 %v575, %v722
    %v731 = vsub.f32 %v577, %v723
    %v732 = vsub.f32 %v579, %v724
    %v733 = vsub.f32 %v581, %v725
    %v734 = vsub.f32 %v583, %v726
    %v735 = vsub.f32 %v585, %v727
    %v736 = vsub.f32 %v587, %v728
    %vm737 = vcmask 523264
    %v739 = vsel %vm737, %v693, 0
    %v742 = vsel %vm737, %v694, 0
    %v745 = vsel %vm737, %v695, 0
    %v748 = vsel %vm737, %v696, 0
    %750 = vmatprep.subr.mxu0 0.0
    %751 = vmatpush1.msra.mxu0 0.0
    %752 = vmatprep.subr.mxu0 0.0
    %753 = vmatpush1.msra.mxu0 0.0
    %754 = vmatprep.subr.mxu0 0.0
    %755 = vmatpush1.msra.mxu0 0.0
    %756 = vmatprep.subr.mxu0 0.0
    %757 = vmatpush1.msra.mxu0 0.0
    %758 = vmatprep.subr.mxu0 0.0
    %759 = vmatpush1.msra.mxu0 0.0
    %760 = vmatprep.subr.mxu0 0.0
    %761 = vmatpush1.msra.mxu0 0.0
    %762 = vmatprep.subr.mxu0 0.0
    %763 = vmatpush1.msra.mxu0 0.0
    %764 = vmatprep.subr.mxu0 0.0
    %765 = vmatpush1.msra.mxu0 0.0
    %766 = vmatprep.subr.mxu0 0.0
    %767 = vmatpush1.msra.mxu0 %v720
    %768 = vmatprep.subr.mxu0 0.0
    %769 = vmatpush1.msra.mxu0 %v719
    %770 = vmatprep.subr.mxu0 0.0
    %771 = vmatpush1.msra.mxu0 %v718
    %772 = vmatprep.subr.mxu0 0.0
    %773 = vmatpush1.msra.mxu0 %v717
    %774 = vmatprep.subr.mxu0 0.0
    %775 = vmatpush1.msra.mxu0 %v716
    %776 = vmatprep.subr.mxu0 0.0
    %777 = vmatpush1.msra.mxu0 %v715
    %778 = vmatprep.subr.mxu0 0.0
    %779 = vmatpush1.msra.mxu0 %v714
    %780 = vmatprep.subr.mxu0 0.0
    %781 = vmatpush1.msra.mxu0 %v713
    %782 = vmatprep.subr.mxu0 0.0
    %783 = vmatpush2.msra.mxu0 0.0
    %784 = vmatprep.subr.mxu0 0.0
    %785 = vmatpush2.msra.mxu0 0.0
    %786 = vmatprep.subr.mxu0 0.0
    %787 = vmatpush2.msra.mxu0 0.0
    %788 = vmatprep.subr.mxu0 0.0
    %789 = vmatpush2.msra.mxu0 0.0
    %790 = vmatprep.subr.mxu0 0.0
    %791 = vmatpush2.msra.mxu0 0.0
    %792 = vmatprep.subr.mxu0 0.0
    %793 = vmatpush2.msra.mxu0 0.0
    %794 = vmatprep.subr.mxu0 0.0
    %795 = vmatpush2.msra.mxu0 0.0
    %796 = vmatprep.subr.mxu0 0.0
    %797 = vmatpush2.msra.mxu0 0.0
    %798 = vmatprep.subr.mxu0 0.0
    %799 = vmatpush2.msra.mxu0 0.0
    %800 = vmatprep.subr.mxu0 0.0
    %801 = vmatpush2.msra.mxu0 0.0
    %802 = vmatprep.subr.mxu0 0.0
    %803 = vmatpush2.msra.mxu0 0.0
    %804 = vmatprep.subr.mxu0 0.0
    %805 = vmatpush2.msra.mxu0 0.0
    %806 = vmatprep.subr.mxu0 0.0
    %807 = vmatpush2.msra.mxu0 0.0
    %808 = vmatprep.subr.mxu0 0.0
    %809 = vmatpush2.msra.mxu0 0.0
    %810 = vmatprep.subr.mxu0 0.0
    %811 = vmatpush2.msra.mxu0 0.0
    %812 = vmatprep.subr.mxu0 0.0
    %813 = vmatpush2.msra.mxu0 0.0
    %814 = vmatprep.mubr.f32.mxu0 0.0
    %815 = vmatmul.mubr.f32.gmra.mxu0 %v739
    %v816 = vpop.f32.mrf.mxu0
    %v817 = vadd.f32 0.0, %v816
    %v818 = vpop.f32.mrf.mxu0
    %819 = vmatprep.mubr.f32.mxu0 0.0
    %820 = vmatmul.mubr.f32.gmra.mxu0 %v742
    %v821 = vpop.f32.mrf.mxu0
    %v822 = vadd.f32 0.0, %v821
    %v823 = vpop.f32.mrf.mxu0
    %824 = vmatprep.mubr.f32.mxu0 0.0
    %825 = vmatmul.mubr.f32.gmra.mxu0 %v745
    %v826 = vpop.f32.mrf.mxu0
    %v827 = vadd.f32 0.0, %v826
    %v828 = vpop.f32.mrf.mxu0
    %829 = vmatprep.mubr.f32.mxu0 0.0
    %830 = vmatmul.mubr.f32.gmra.mxu0 %v748
    %v831 = vpop.f32.mrf.mxu0
    %v832 = vadd.f32 0.0, %v831
    %v833 = vpop.f32.mrf.mxu0
    %834 = vdwg.mxu0
    %835 = vmatprep.subr.mxu0 0.0
    %836 = vmatpush1.msra.mxu0 0.0
    %837 = vmatprep.subr.mxu0 0.0
    %838 = vmatpush1.msra.mxu0 0.0
    %839 = vmatprep.subr.mxu0 0.0
    %840 = vmatpush1.msra.mxu0 0.0
    %841 = vmatprep.subr.mxu0 0.0
    %842 = vmatpush1.msra.mxu0 0.0
    %843 = vmatprep.subr.mxu0 0.0
    %844 = vmatpush1.msra.mxu0 0.0
    %845 = vmatprep.subr.mxu0 0.0
    %846 = vmatpush1.msra.mxu0 0.0
    %847 = vmatprep.subr.mxu0 0.0
    %848 = vmatpush1.msra.mxu0 0.0
    %849 = vmatprep.subr.mxu0 0.0
    %850 = vmatpush1.msra.mxu0 0.0
    %851 = vmatprep.subr.mxu0 0.0
    %852 = vmatpush1.msra.mxu0 %v736
    %853 = vmatprep.subr.mxu0 0.0
    %854 = vmatpush1.msra.mxu0 %v735
    %855 = vmatprep.subr.mxu0 0.0
    %856 = vmatpush1.msra.mxu0 %v734
    %857 = vmatprep.subr.mxu0 0.0
    %858 = vmatpush1.msra.mxu0 %v733
    %859 = vmatprep.subr.mxu0 0.0
    %860 = vmatpush1.msra.mxu0 %v732
    %861 = vmatprep.subr.mxu0 0.0
    %862 = vmatpush1.msra.mxu0 %v731
    %863 = vmatprep.subr.mxu0 0.0
    %864 = vmatpush1.msra.mxu0 %v730
    %865 = vmatprep.subr.mxu0 0.0
    %866 = vmatpush1.msra.mxu0 %v729
    %867 = vmatprep.subr.mxu0 0.0
    %868 = vmatpush2.msra.mxu0 0.0
    %869 = vmatprep.subr.mxu0 0.0
    %870 = vmatpush2.msra.mxu0 0.0
    %871 = vmatprep.subr.mxu0 0.0
    %872 = vmatpush2.msra.mxu0 0.0
    %873 = vmatprep.subr.mxu0 0.0
    %874 = vmatpush2.msra.mxu0 0.0
    %875 = vmatprep.subr.mxu0 0.0
    %876 = vmatpush2.msra.mxu0 0.0
    %877 = vmatprep.subr.mxu0 0.0
    %878 = vmatpush2.msra.mxu0 0.0
    %879 = vmatprep.subr.mxu0 0.0
    %880 = vmatpush2.msra.mxu0 0.0
    %881 = vmatprep.subr.mxu0 0.0
    %882 = vmatpush2.msra.mxu0 0.0
    %883 = vmatprep.subr.mxu0 0.0
    %884 = vmatpush2.msra.mxu0 0.0
    %885 = vmatprep.subr.mxu0 0.0
    %886 = vmatpush2.msra.mxu0 0.0
    %887 = vmatprep.subr.mxu0 0.0
    %888 = vmatpush2.msra.mxu0 0.0
    %889 = vmatprep.subr.mxu0 0.0
    %890 = vmatpush2.msra.mxu0 0.0
    %891 = vmatprep.subr.mxu0 0.0
    %892 = vmatpush2.msra.mxu0 0.0
    %893 = vmatprep.subr.mxu0 0.0
    %894 = vmatpush2.msra.mxu0 0.0
    %895 = vmatprep.subr.mxu0 0.0
    %896 = vmatpush2.msra.mxu0 0.0
    %897 = vmatprep.subr.mxu0 0.0
    %898 = vmatpush2.msra.mxu0 0.0
    %899 = vmatprep.mubr.f32.mxu0 0.0
    %900 = vmatmul.mubr.f32.gmra.mxu0 %v739
    %v901 = vpop.f32.mrf.mxu0
    %v902 = vadd.f32 0.0, %v901
    %v903 = vpop.f32.mrf.mxu0
    %904 = vmatprep.mubr.f32.mxu0 0.0
    %905 = vmatmul.mubr.f32.gmra.mxu0 %v742
    %v906 = vpop.f32.mrf.mxu0
    %v907 = vadd.f32 0.0, %v906
    %v908 = vpop.f32.mrf.mxu0
    %909 = vmatprep.mubr.f32.mxu0 0.0
    %910 = vmatmul.mubr.f32.gmra.mxu0 %v745
    %v911 = vpop.f32.mrf.mxu0
    %v912 = vadd.f32 0.0, %v911
    %v913 = vpop.f32.mrf.mxu0
    %914 = vmatprep.mubr.f32.mxu0 0.0
    %915 = vmatmul.mubr.f32.gmra.mxu0 %v748
    %v916 = vpop.f32.mrf.mxu0
    %v917 = vadd.f32 0.0, %v916
    %v918 = vpop.f32.mrf.mxu0
    %919 = vdwg.mxu0
    %v920 = vmul.f32 %v902, 0.125
    %v921 = vmul.f32 %v907, 0.125
    %v922 = vmul.f32 %v912, 0.125
    %v923 = vmul.f32 %v917, 0.125
    %924 = vmatprep.subr.mxu0 0.0
    %925 = vmatpush1.msra.mxu0 0.0
    %926 = vmatprep.subr.mxu0 0.0
    %927 = vmatpush1.msra.mxu0 0.0
    %928 = vmatprep.subr.mxu0 0.0
    %929 = vmatpush1.msra.mxu0 0.0
    %930 = vmatprep.subr.mxu0 0.0
    %931 = vmatpush1.msra.mxu0 0.0
    %932 = vmatprep.subr.mxu0 0.0
    %933 = vmatpush1.msra.mxu0 0.0
    %934 = vmatprep.subr.mxu0 0.0
    %935 = vmatpush1.msra.mxu0 0.0
    %936 = vmatprep.subr.mxu0 0.0
    %937 = vmatpush1.msra.mxu0 0.0
    %938 = vmatprep.subr.mxu0 0.0
    %939 = vmatpush1.msra.mxu0 0.0
    %940 = vmatprep.subr.mxu0 0.0
    %941 = vmatpush1.msra.mxu0 %v690
    %942 = vmatprep.subr.mxu0 0.0
    %943 = vmatpush1.msra.mxu0 %v685
    %944 = vmatprep.subr.mxu0 0.0
    %945 = vmatpush1.msra.mxu0 %v680
    %946 = vmatprep.subr.mxu0 0.0
    %947 = vmatpush1.msra.mxu0 %v675
    %948 = vmatprep.subr.mxu0 0.0
    %949 = vmatpush1.msra.mxu0 %v670
    %950 = vmatprep.subr.mxu0 0.0
    %951 = vmatpush1.msra.mxu0 %v665
    %952 = vmatprep.subr.mxu0 0.0
    %953 = vmatpush1.msra.mxu0 %v660
    %954 = vmatprep.subr.mxu0 0.0
    %955 = vmatpush1.msra.mxu0 %v655
    %956 = vmatprep.subr.mxu0 0.0
    %957 = vmatpush2.msra.mxu0 0.0
    %958 = vmatprep.subr.mxu0 0.0
    %959 = vmatpush2.msra.mxu0 0.0
    %960 = vmatprep.subr.mxu0 0.0
    %961 = vmatpush2.msra.mxu0 0.0
    %962 = vmatprep.subr.mxu0 0.0
    %963 = vmatpush2.msra.mxu0 0.0
    %964 = vmatprep.subr.mxu0 0.0
    %965 = vmatpush2.msra.mxu0 0.0
    %966 = vmatprep.subr.mxu0 0.0
    %967 = vmatpush2.msra.mxu0 0.0
    %968 = vmatprep.subr.mxu0 0.0
    %969 = vmatpush2.msra.mxu0 0.0
    %970 = vmatprep.subr.mxu0 0.0
    %971 = vmatpush2.msra.mxu0 0.0
    %972 = vmatprep.subr.mxu0 0.0
    %973 = vmatpush2.msra.mxu0 0.0
    %974 = vmatprep.subr.mxu0 0.0
    %975 = vmatpush2.msra.mxu0 0.0
    %976 = vmatprep.subr.mxu0 0.0
    %977 = vmatpush2.msra.mxu0 0.0
    %978 = vmatprep.subr.mxu0 0.0
    %979 = vmatpush2.msra.mxu0 0.0
    %980 = vmatprep.subr.mxu0 0.0
    %981 = vmatpush2.msra.mxu0 0.0
    %982 = vmatprep.subr.mxu0 0.0
    %983 = vmatpush2.msra.mxu0 0.0
    %984 = vmatprep.subr.mxu0 0.0
    %985 = vmatpush2.msra.mxu0 0.0
    %986 = vmatprep.subr.mxu0 0.0
    %987 = vmatpush2.msra.mxu0 0.0
    %988 = vmatprep.mubr.f32.mxu0 0.0
    %989 = vmatmul.mubr.f32.gmra.mxu0 %v739
    %v990 = vpop.f32.mrf.mxu0
    %v991 = vadd.f32 0.0, %v990
    %v992 = vpop.f32.mrf.mxu0
    %993 = vmatprep.mubr.f32.mxu0 0.0
    %994 = vmatmul.mubr.f32.gmra.mxu0 %v742
    %v995 = vpop.f32.mrf.mxu0
    %v996 = vadd.f32 0.0, %v995
    %v997 = vpop.f32.mrf.mxu0
    %998 = vmatprep.mubr.f32.mxu0 0.0
    %999 = vmatmul.mubr.f32.gmra.mxu0 %v745
    %v1000 = vpop.f32.mrf.mxu0
    %v1001 = vadd.f32 0.0, %v1000
    %v1002 = vpop.f32.mrf.mxu0
    %1003 = vmatprep.mubr.f32.mxu0 0.0
    %1004 = vmatmul.mubr.f32.gmra.mxu0 %v748
    %v1005 = vpop.f32.mrf.mxu0
    %v1006 = vadd.f32 0.0, %v1005
    %v1007 = vpop.f32.mrf.mxu0
    %1008 = vdwg.mxu0
    %v1009 = vmul.f32 %v991, %v693
    %v1010 = vmul.f32 %v996, %v694
    %v1011 = vmul.f32 %v1001, %v695
    %v1012 = vmul.f32 %v1006, %v696
    %v1013 = vsel %vm737, %v1009, 0.0
    %1014 = vadd.xlane.f32.xlu0 %v1013
    %v1015 = vpop.xlane.xlu0 %1014
    %v1016 = vsel %vm737, %v1010, 0.0
    %1017 = vadd.xlane.f32.xlu0 %v1016
    %v1018 = vpop.xlane.xlu0 %1017
    %v1019 = vsel %vm737, %v1011, 0.0
    %1020 = vadd.xlane.f32.xlu0 %v1019
    %v1021 = vpop.xlane.xlu0 %1020
    %v1022 = vsel %vm737, %v1012, 0.0
    %1023 = vadd.xlane.f32.xlu0 %v1022
    %v1024 = vpop.xlane.xlu0 %1023
    %v1025 = vmul.f32 %v817, %v817
    %v1026 = vmul.f32 %v822, %v822
    %v1027 = vmul.f32 %v827, %v827
    %v1028 = vmul.f32 %v832, %v832
    %v1029 = vmul.f32 %v1025, 120.0
    %v1030 = vmul.f32 %v1026, 120.0
    %v1031 = vmul.f32 %v1027, 120.0
    %v1032 = vmul.f32 %v1028, 120.0
    %v1033 = vsub.f32 %v1015, %v1029
    %v1034 = vsub.f32 %v1018, %v1030
    %v1035 = vsub.f32 %v1021, %v1031
    %v1036 = vsub.f32 %v1024, %v1032
    %v1037 = vmul.f32 %v1033, 0.125
    %v1038 = vmul.f32 %v1034, 0.125
    %v1039 = vmul.f32 %v1035, 0.125
    %v1040 = vmul.f32 %v1036, 0.125
    %v1041 = vmul.f32 %v920, %v920
    %v1042 = vmul.f32 %v921, %v921
    %v1043 = vmul.f32 %v922, %v922
    %v1044 = vmul.f32 %v923, %v923
    %v1045 = vsub.f32 %v1037, %v1041
    %v1046 = vsub.f32 %v1038, %v1042
    %v1047 = vsub.f32 %v1039, %v1043
    %v1048 = vsub.f32 %v1040, %v1044
    %v1049 = vmax.f32 %v1045, 0.0
    %v1050 = vmax.f32 %v1046, 0.0
    %v1051 = vmax.f32 %v1047, 0.0
    %v1052 = vmax.f32 %v1048, 0.0
    %v1053 = vadd.f32 %v1049, 1e-05
    %v1054 = vadd.f32 %v1050, 1e-05
    %v1055 = vadd.f32 %v1051, 1e-05
    %v1056 = vadd.f32 %v1052, 1e-05
    %v1057 = vrsqrt.pop %v1053
    %v1058 = vrsqrt.pop %v1054
    %v1059 = vrsqrt.pop %v1055
    %v1060 = vrsqrt.pop %v1056
    %v1061 = vmul.f32 %v697, %v1057
    %v1062 = vmul.f32 %v698, %v1058
    %v1063 = vmul.f32 %v699, %v1059
    %v1064 = vmul.f32 %v700, %v1060
    %v1065 = vmul.f32 %v920, %v1061
    %v1066 = vmul.f32 %v921, %v1062
    %v1067 = vmul.f32 %v922, %v1063
    %v1068 = vmul.f32 %v923, %v1064
    %v1069 = vsub.f32 %v701, %v1065
    %v1070 = vsub.f32 %v702, %v1066
    %v1071 = vsub.f32 %v703, %v1067
    %v1072 = vsub.f32 %v704, %v1068
    %1073 = vmatprep.subr.mxu0 0.0
    %1074 = vmatpush1.msra.mxu0 0.0
    %1075 = vmatprep.subr.mxu0 0.0
    %1076 = vmatpush1.msra.mxu0 0.0
    %1077 = vmatprep.subr.mxu0 0.0
    %1078 = vmatpush1.msra.mxu0 0.0
    %1079 = vmatprep.subr.mxu0 0.0
    %1080 = vmatpush1.msra.mxu0 0.0
    %1081 = vmatprep.subr.mxu0 0.0
    %1082 = vmatpush1.msra.mxu0 0.0
    %1083 = vmatprep.subr.mxu0 0.0
    %1084 = vmatpush1.msra.mxu0 0.0
    %1085 = vmatprep.subr.mxu0 0.0
    %1086 = vmatpush1.msra.mxu0 0.0
    %1087 = vmatprep.subr.mxu0 0.0
    %1088 = vmatpush1.msra.mxu0 0.0
    %1089 = vmatprep.subr.mxu0 0.0
    %1090 = vmatpush1.msra.mxu0 %v571
    %1091 = vmatprep.subr.mxu0 0.0
    %1092 = vmatpush1.msra.mxu0 %v570
    %1093 = vmatprep.subr.mxu0 0.0
    %1094 = vmatpush1.msra.mxu0 %v569
    %1095 = vmatprep.subr.mxu0 0.0
    %1096 = vmatpush1.msra.mxu0 %v568
    %1097 = vmatprep.subr.mxu0 0.0
    %1098 = vmatpush1.msra.mxu0 %v567
    %1099 = vmatprep.subr.mxu0 0.0
    %1100 = vmatpush1.msra.mxu0 %v566
    %1101 = vmatprep.subr.mxu0 0.0
    %1102 = vmatpush1.msra.mxu0 %v565
    %1103 = vmatprep.subr.mxu0 0.0
    %1104 = vmatpush1.msra.mxu0 %v564
    %1105 = vmatprep.subr.mxu0 0.0
    %1106 = vmatpush2.msra.mxu0 0.0
    %1107 = vmatprep.subr.mxu0 0.0
    %1108 = vmatpush2.msra.mxu0 0.0
    %1109 = vmatprep.subr.mxu0 0.0
    %1110 = vmatpush2.msra.mxu0 0.0
    %1111 = vmatprep.subr.mxu0 0.0
    %1112 = vmatpush2.msra.mxu0 0.0
    %1113 = vmatprep.subr.mxu0 0.0
    %1114 = vmatpush2.msra.mxu0 0.0
    %1115 = vmatprep.subr.mxu0 0.0
    %1116 = vmatpush2.msra.mxu0 0.0
    %1117 = vmatprep.subr.mxu0 0.0
    %1118 = vmatpush2.msra.mxu0 0.0
    %1119 = vmatprep.subr.mxu0 0.0
    %1120 = vmatpush2.msra.mxu0 0.0
    %1121 = vmatprep.subr.mxu0 0.0
    %1122 = vmatpush2.msra.mxu0 0.0
    %1123 = vmatprep.subr.mxu0 0.0
    %1124 = vmatpush2.msra.mxu0 0.0
    %1125 = vmatprep.subr.mxu0 0.0
    %1126 = vmatpush2.msra.mxu0 0.0
    %1127 = vmatprep.subr.mxu0 0.0
    %1128 = vmatpush2.msra.mxu0 0.0
    %1129 = vmatprep.subr.mxu0 0.0
    %1130 = vmatpush2.msra.mxu0 0.0
    %1131 = vmatprep.subr.mxu0 0.0
    %1132 = vmatpush2.msra.mxu0 0.0
    %1133 = vmatprep.subr.mxu0 0.0
    %1134 = vmatpush2.msra.mxu0 0.0
    %1135 = vmatprep.subr.mxu0 0.0
    %1136 = vmatpush2.msra.mxu0 0.0
    %1137 = vmatprep.mubr.f32.mxu0 0.0
    %1138 = vmatmul.mubr.f32.gmra.mxu0 %v739
    %v1139 = vpop.f32.mrf.mxu0
    %v1140 = vadd.f32 0.0, %v1139
    %v1141 = vpop.f32.mrf.mxu0
    %1142 = vmatprep.mubr.f32.mxu0 0.0
    %1143 = vmatmul.mubr.f32.gmra.mxu0 %v742
    %v1144 = vpop.f32.mrf.mxu0
    %v1145 = vadd.f32 0.0, %v1144
    %v1146 = vpop.f32.mrf.mxu0
    %1147 = vmatprep.mubr.f32.mxu0 0.0
    %1148 = vmatmul.mubr.f32.gmra.mxu0 %v745
    %v1149 = vpop.f32.mrf.mxu0
    %v1150 = vadd.f32 0.0, %v1149
    %v1151 = vpop.f32.mrf.mxu0
    %1152 = vmatprep.mubr.f32.mxu0 0.0
    %1153 = vmatmul.mubr.f32.gmra.mxu0 %v748
    %v1154 = vpop.f32.mrf.mxu0
    %v1155 = vadd.f32 0.0, %v1154
    %v1156 = vpop.f32.mrf.mxu0
    %1157 = vdwg.mxu0
    %1159 = vset.pattern.permute.xlu0 0
    %1160 = vperm.xlu0 %1159, %v1061
    %v1161 = vpop.permute.xlu0 %1160
    %1164 = vset.pattern.permute.xlu0 0
    %1165 = vperm.xlu0 %1164, %v1062
    %v1166 = vpop.permute.xlu0 %1165
    %1169 = vset.pattern.permute.xlu0 0
    %1170 = vperm.xlu0 %1169, %v1063
    %v1171 = vpop.permute.xlu0 %1170
    %1174 = vset.pattern.permute.xlu0 0
    %1175 = vperm.xlu0 %1174, %v1064
    %v1176 = vpop.permute.xlu0 %1175
    %v1178 = vmul.f32 %v1161, %v1140
    %v1179 = vmul.f32 %v1166, %v1145
    %v1180 = vmul.f32 %v1171, %v1150
    %v1181 = vmul.f32 %v1176, %v1155
    %1183 = vset.pattern.permute.xlu0 0
    %1184 = vperm.xlu0 %1183, %v1069
    %v1185 = vpop.permute.xlu0 %1184
    %1188 = vset.pattern.permute.xlu0 0
    %1189 = vperm.xlu0 %1188, %v1070
    %v1190 = vpop.permute.xlu0 %1189
    %1193 = vset.pattern.permute.xlu0 0
    %1194 = vperm.xlu0 %1193, %v1071
    %v1195 = vpop.permute.xlu0 %1194
    %1198 = vset.pattern.permute.xlu0 0
    %1199 = vperm.xlu0 %1198, %v1072
    %v1200 = vpop.permute.xlu0 %1199
    %v1202 = vadd.f32 %v1178, %v1185
    %v1203 = vadd.f32 %v1179, %v1190
    %v1204 = vadd.f32 %v1180, %v1195
    %v1205 = vadd.f32 %v1181, %v1200
    %v1206 = vmul.f32 %v1202, 0.01
    %v1207 = vmul.f32 %v1203, 0.01
    %v1208 = vmul.f32 %v1204, 0.01
    %v1209 = vmul.f32 %v1205, 0.01
    %v1210 = vmax.f32 %v1202, %v1206
    %v1211 = vmax.f32 %v1203, %v1207
    %v1212 = vmax.f32 %v1204, %v1208
    %v1213 = vmax.f32 %v1205, %v1209
    %v1214 = vld [vmem:[%s7] sm:$0xff]
    %v1215 = vld [vmem:[%s7 + $0x8] sm:$0xff]
    %v1216 = vld [vmem:[%s7 + $0x10] sm:$0xff]
    %v1217 = vld [vmem:[%s7 + $0x18] sm:$0xff]
    %1219 = vset.pattern.permute.xlu0 0
    %1220 = vperm.xlu0 %1219, %v1214
    %v1221 = vpop.permute.xlu0 %1220
    %1224 = vset.pattern.permute.xlu0 0
    %1225 = vperm.xlu0 %1224, %v1215
    %v1226 = vpop.permute.xlu0 %1225
    %1229 = vset.pattern.permute.xlu0 0
    %1230 = vperm.xlu0 %1229, %v1216
    %v1231 = vpop.permute.xlu0 %1230
    %1234 = vset.pattern.permute.xlu0 0
    %1235 = vperm.xlu0 %1234, %v1217
    %v1236 = vpop.permute.xlu0 %1235
    %v1238 = vmul.f32 %v1210, %v1221
    %v1239 = vmul.f32 %v1211, %v1226
    %v1240 = vmul.f32 %v1212, %v1231
    %v1241 = vmul.f32 %v1213, %v1236
    %v1242 = vadd.f32 %v1238, %v1239
    %v1243 = vadd.f32 %v1242, %v1240
    %v1244 = vadd.f32 %v1243, %v1241
    %v1245 = vrot.slane %v1244, 4
    %v1246 = vadd.f32 %v1244, %v1245
    %v1247 = vrot.slane %v1246, 2
    %v1248 = vadd.f32 %v1246, %v1247
    %v1249 = vrot.slane %v1248, 1
    %v1250 = vadd.f32 %v1248, %v1249
    %v1251 = vld [vmem:[#allocation2] sm:$0x1]
    %1253 = vset.pattern.permute.xlu0 0
    %1254 = vperm.xlu0 %1253, %v1251
    %v1255 = vpop.permute.xlu0 %1254
    %v1257 = vlaneseq
    %v1258 = vshrl.u32 %v1257, 7
    %v1259 = vsub.s32 0, %v1258
    %v1260 = vrot.slane %v1255, %v1259
    %v1261 = vadd.f32 %v1250, %v1260
    %1262 = vst [vmem:[#allocation3] sm:$0x1] %v1261
    // Predicated region
    $region38: #{tpu_custom_call.1} parent=1 // pred_check
      _
    $region39: #{tpu_custom_call.1} parent=1 // pred_check_branch
      %1264 = sbr.rel (0) target = $region41
    $region40: #{tpu_custom_call.1} parent=1 // pred_region
      %s1266 = ssub.s32 16, 16
      %1267 = vsyncadd [#allocation4], %s1266
      %s1269 = sshll.u32 [#allocation3], 4
      %s1270 = int_to_ptr.vmem [resolvable:$true] %s1269
      %1272 = dma.vmem_to_hbm [thread:$0]  %s1270, 16, %s9, [#allocation4]
    $region41: #{tpu_custom_call.1} parent=1 // pred_fallthru
      _
    // Predicated region
    $region42: #{tpu_custom_call.1} parent=1 // pred_check
      _
    $region43: #{tpu_custom_call.1} parent=1 // pred_check_branch
      %1274 = sbr.rel (0) target = $region45
    $region44: #{tpu_custom_call.1} parent=1 // pred_region
      %1275 = dma.done [#allocation4], 16
    $region45: #{tpu_custom_call.1} parent=1 // pred_fallthru
      _
    %1276 = vsyncpa [#allocation4], 1

</llo_original>
